<compile_context>
chip_gen: v6e
topology: v6e:2x2x1
jax: 0.10.0
libtpu: 0.0.40
codegen_flags: <defaults>
</compile_context>

<pallas_src>
import functools

import jax
import jax.numpy as jnp
from jax.experimental import pallas as pl
from jax.experimental.pallas import tpu as pltpu


def _round_up(a, b):
    return (a + b - 1) // b * b


def _layer_norm_kernel(x_ref, g_ref, o_ref, *, eps, inv_c):
    # x_ref: (Bt, C, HWt); g_ref: (1, C, 1); o_ref: (Bt, C, HWt)
    xf = x_ref[...].astype(jnp.float32)                 # input-dtype tile, upcast on use
    s1 = jnp.sum(xf, axis=1, keepdims=True)             # (Bt, 1, HWt)  f32
    s2 = jnp.sum(xf * xf, axis=1, keepdims=True)        # (Bt, 1, HWt)  f32
    mean = s1 * inv_c
    var = jnp.maximum(s2 * inv_c - mean * mean, 0.0)    # guard f32 cancellation
    inv = jax.lax.rsqrt(var + eps)                      # (Bt, 1, HWt)
    shift = mean * inv                                  # (Bt, 1, HWt)
    g = g_ref[...].astype(jnp.float32)                  # (1, C, 1)
    # Single fused scale-and-shift over the big tile; broadcasts stay small.
    o_ref[...] = ((xf * inv - shift) * g).astype(o_ref.dtype)


def _vmem_capacity_bytes():
    """Per-TensorCore VMEM capacity; conservative 64 MiB fallback (v7x)."""
    try:
        info = pltpu.get_tpu_info()
        cap = getattr(info, "vmem_capacity_bytes", None)
        if cap:
            return int(cap)
    except Exception:
        pass
    return 64 * 1024 * 1024


def _choose_tiles(B, C, HW, itemsize, vmem_budget_bytes):
    """Pick (bt, hwt, hw_pad, grid).

    Live VMEM per step ~= 4 * block_in_bytes (double-buffered in + out)
                        + 2 * block_f32_bytes (f32 working copy / fused temps).
    Blocks are sized against that (dtype-aware), hwt is a power-of-two
    multiple of 128 (lane-dense), and we aim for >= 4 grid steps.
    """
    per_elem_live = 4 * itemsize + 2 * 4
    max_block_elems = max(C * 128, vmem_budget_bytes // per_elem_live)

    hw128 = _round_up(max(HW, 1), 128)
    m = hw128 // 128                                   # spatial extent in lanes/128
    divs = sorted(d for d in range(1, m + 1) if m % d == 0)

    hw_cap_units = max(1, max_block_elems // (C * 128))
    k = max(d for d in divs if d <= hw_cap_units)
    hwt = 128 * k
    n_hw = m // k

    bt_cap = max(1, max_block_elems // (C * hwt))
    bt = max(d for d in range(1, B + 1) if B % d == 0 and d <= bt_cap)

    # Aim for >= 4 grid steps (2 TensorCores on v7x x double-buffering);
    # shrink the batch tile first, then the spatial tile.
    total = (B // bt) * n_hw
    while total < 4:
        if bt > 1:
            bt = max(d for d in range(1, bt) if B % d == 0)
        elif k > 1:
            smaller = [d for d in divs if d < k]
            k = smaller[-1]
            hwt = 128 * k
            n_hw = m // k
        else:
            break
        total = (B // bt) * n_hw

    hw_pad = 128 * m
    return bt, hwt, hw_pad, (B // bt, n_hw)


def layer_norm(x, g):
    """x: (B, C, H, W) NCHW; g: (C,) or (1, C, 1, 1). Returns (B, C, H, W)."""
    B, C, H, W = x.shape
    HW = H * W
    eps = 1e-5 if x.dtype == jnp.float32 else 1e-3

    vmem_cap = _vmem_capacity_bytes()
    # ~75% of physical per-core VMEM: ~48 MiB on v7x, ~96 MiB on v5e/v6e.
    vmem_budget = min((vmem_cap * 3) // 4, 96 * 1024 * 1024)
    vmem_limit = int(max(32 * 1024 * 1024, vmem_budget))

    bt, hwt, hw_pad, grid = _choose_tiles(B, C, HW, x.dtype.itemsize, vmem_budget)

    x_flat = x.reshape(B, C, HW)
    if hw_pad != HW:
        # Lane-dense padding; padded pixels are all-zero over C -> finite output,
        # sliced off below.
        x_flat = jnp.pad(x_flat, ((0, 0), (0, 0), (0, hw_pad - HW)))
    g3 = jnp.asarray(g).reshape(1, C, 1).astype(jnp.float32)

    kernel = functools.partial(_layer_norm_kernel, eps=eps, inv_c=1.0 / C)

    out_flat = pl.pallas_call(
        kernel,
        out_shape=jax.ShapeDtypeStruct((B, C, hw_pad), x.dtype),
        grid_spec=pltpu.PrefetchScalarGridSpec(
            num_scalar_prefetch=0,
            grid=grid,
            in_specs=[
                pl.BlockSpec((bt, C, hwt), lambda b, s: (b, 0, s)),
                pl.BlockSpec((1, C, 1), lambda b, s: (0, 0, 0)),
            ],
            out_specs=pl.BlockSpec((bt, C, hwt), lambda b, s: (b, 0, s)),
        ),
        compiler_params=pltpu.CompilerParams(
            dimension_semantics=("parallel", "parallel"),
            vmem_limit_bytes=vmem_limit,
        ),
    )(x_flat, g3)

    if hw_pad != HW:
        out_flat = out_flat[:, :, :HW]
    return out_flat.reshape(B, C, H, W)


def layer_norm_ref(x, g):
    """Plain-JAX reference replicating the PyTorch forward."""
    eps = 1e-5 if x.dtype == jnp.float32 else 1e-3
    C = x.shape[1]
    g4 = jnp.asarray(g).reshape(1, C, 1, 1).astype(jnp.float32)
    xf = x.astype(jnp.float32)
    mean = jnp.mean(xf, axis=1, keepdims=True)
    centered = xf - mean
    var = jnp.mean(centered * centered, axis=1, keepdims=True)
    return ((centered * jax.lax.rsqrt(var + eps)) * g4).astype(x.dtype)


if __name__ == "__main__":
    key = jax.random.PRNGKey(0)

    # Case 1: module-sized shape (dim=4), HW = 256 (lane-dense, multi-step grid).
    k1, k2, key = jax.random.split(key, 3)
    x1 = jax.random.normal(k1, (2, 4, 16, 16), dtype=jnp.float32)
    g1 = 1.0 + 0.1 * jax.random.normal(k2, (4,), dtype=jnp.float32)
    o1 = jax.block_until_ready(layer_norm(x1, g1))
    r1 = layer_norm_ref(x1, g1)
    assert o1.shape == x1.shape
    assert jnp.allclose(o1, r1, atol=2e-5, rtol=2e-5), "case1 mismatch"

    # Case 2: wider channels, larger spatial extent.
    k1, k2, key = jax.random.split(key, 3)
    x2 = jax.random.normal(k1, (2, 32, 32, 32), dtype=jnp.float32)
    g2 = 1.0 + 0.1 * jax.random.normal(k2, (32,), dtype=jnp.float32)
    o2 = jax.block_until_ready(layer_norm(x2, g2))
    r2 = layer_norm_ref(x2, g2)
    assert jnp.allclose(o2, r2, atol=2e-5, rtol=2e-5), "case2 mismatch"

    # Case 3: HW not a multiple of 128 (exercises wrapper padding + slice).
    k1, k2, key = jax.random.split(key, 3)
    x3 = jax.random.normal(k1, (2, 16, 7, 7), dtype=jnp.float32)
    g3 = 1.0 + 0.1 * jax.random.normal(k2, (16,), dtype=jnp.float32)
    o3 = jax.block_until_ready(layer_norm(x3, g3))
    r3 = layer_norm_ref(x3, g3)
    assert jnp.allclose(o3, r3, atol=2e-5, rtol=2e-5), "case3 mismatch"

    # Case 4: bf16 input (eps = 1e-3 path, dtype-aware tiling).
    k1, k2, key = jax.random.split(key, 3)
    x4 = jax.random.normal(k1, (2, 8, 16, 16), dtype=jnp.float32).astype(jnp.bfloat16)
    g4 = (1.0 + 0.1 * jax.random.normal(k2, (8,), dtype=jnp.float32))
    o4 = jax.block_until_ready(layer_norm(x4, g4))
    r4 = layer_norm_ref(x4, g4)
    assert jnp.allclose(o4.astype(jnp.float32), r4.astype(jnp.float32),
                        atol=3e-2, rtol=3e-2), "case4 mismatch"

    print("KERNEL_OK")
</pallas_src>

<mosaic_0001>
module attributes {stable_mosaic.version = 11 : i64} {
  func.func @_layer_norm_kernel(%arg0: i32, %arg1: i32, %arg2: memref<1x4x128xf32, #tpu.memory_space<vmem>>, %arg3: memref<1x4x1xf32, #tpu.memory_space<vmem>>, %arg4: memref<1x4x128xf32, #tpu.memory_space<vmem>>) attributes {dimension_semantics = [#tpu.dimension_semantics<parallel>, #tpu.dimension_semantics<parallel>], iteration_bounds = array<i64: 2, 2>, scalar_prefetch = 0 : i64, scratch_operands = 0 : i64, tpu.core_type = #tpu.core_type<tc>, window_params = [{transform_indices = @transform_0, window_bounds = array<i64: 1, 4, 128>}, {pipeline_mode = #tpu.pipeline_mode<synchronous>, transform_indices = @transform_1, window_bounds = array<i64: 1, 4, 1>}, {transform_indices = @transform_2, window_bounds = array<i64: 1, 4, 128>}]} {
    %c0 = arith.constant 0 : index
    %c0_0 = arith.constant 0 : index
    %c0_1 = arith.constant 0 : index
    %0 = vector.load %arg2[%c0, %c0_0, %c0_1] : memref<1x4x128xf32, #tpu.memory_space<vmem>>, vector<1x4x128xf32>
    %cst = arith.constant dense<0.000000e+00> : vector<1x128xf32>
    %1 = vector.multi_reduction <add>, %0, %cst [1] : vector<1x4x128xf32> to vector<1x128xf32>
    %2 = vector.shape_cast %1 : vector<1x128xf32> to vector<1x1x128xf32>
    %3 = arith.mulf %0, %0 : vector<1x4x128xf32>
    %cst_2 = arith.constant dense<0.000000e+00> : vector<1x128xf32>
    %4 = vector.multi_reduction <add>, %3, %cst_2 [1] : vector<1x4x128xf32> to vector<1x128xf32>
    %5 = vector.shape_cast %4 : vector<1x128xf32> to vector<1x1x128xf32>
    %cst_3 = arith.constant 2.500000e-01 : f32
    %6 = vector.broadcast %cst_3 : f32 to vector<1x1x128xf32>
    %7 = arith.mulf %2, %6 : vector<1x1x128xf32>
    %cst_4 = arith.constant 2.500000e-01 : f32
    %8 = vector.broadcast %cst_4 : f32 to vector<1x1x128xf32>
    %9 = arith.mulf %5, %8 : vector<1x1x128xf32>
    %10 = arith.mulf %7, %7 : vector<1x1x128xf32>
    %11 = arith.subf %9, %10 : vector<1x1x128xf32>
    %cst_5 = arith.constant 0.000000e+00 : f32
    %12 = vector.broadcast %cst_5 : f32 to vector<1x1x128xf32>
    %13 = arith.maximumf %11, %12 : vector<1x1x128xf32>
    %cst_6 = arith.constant 9.99999974E-6 : f32
    %14 = vector.broadcast %cst_6 : f32 to vector<1x1x128xf32>
    %15 = arith.addf %13, %14 : vector<1x1x128xf32>
    %16 = math.rsqrt %15 : vector<1x1x128xf32>
    %17 = arith.mulf %7, %16 : vector<1x1x128xf32>
    %c0_7 = arith.constant 0 : index
    %c0_8 = arith.constant 0 : index
    %c0_9 = arith.constant 0 : index
    %18 = vector.load %arg3[%c0_7, %c0_8, %c0_9] : memref<1x4x1xf32, #tpu.memory_space<vmem>>, vector<1x4x1xf32>
    %19 = vector.broadcast %16 : vector<1x1x128xf32> to vector<1x4x128xf32>
    %20 = arith.mulf %0, %19 : vector<1x4x128xf32>
    %21 = vector.broadcast %17 : vector<1x1x128xf32> to vector<1x4x128xf32>
    %22 = arith.subf %20, %21 : vector<1x4x128xf32>
    %23 = vector.broadcast %18 : vector<1x4x1xf32> to vector<1x4x128xf32>
    %24 = arith.mulf %22, %23 : vector<1x4x128xf32>
    %c0_10 = arith.constant 0 : index
    %c0_11 = arith.constant 0 : index
    %c0_12 = arith.constant 0 : index
    %25 = vector.load %arg4[%c0_10, %c0_11, %c0_12] : memref<1x4x128xf32, #tpu.memory_space<vmem>>, vector<1x4x128xf32>
    tpu.vector_store %arg4[%c0_10, %c0_11, %c0_12], %24 {strides = array<i32>} : memref<1x4x128xf32, #tpu.memory_space<vmem>>, vector<1x4x128xf32>,
    return
  }
  func.func @transform_0(%arg0: i32, %arg1: i32) -> (i32, i32, i32) {
    %c0_i32 = arith.constant 0 : i32
    %c0_i32_0 = arith.constant 0 : i32
    return %arg0, %c0_i32, %arg1 : i32, i32, i32
  }
  func.func @transform_1(%arg0: i32, %arg1: i32) -> (i32, i32, i32) {
    %c0_i32 = arith.constant 0 : i32
    %c0_i32_0 = arith.constant 0 : i32
    %c0_i32_1 = arith.constant 0 : i32
    %c0_i32_2 = arith.constant 0 : i32
    return %c0_i32, %c0_i32_0, %c0_i32_1 : i32, i32, i32
  }
  func.func @transform_2(%arg0: i32, %arg1: i32) -> (i32, i32, i32) {
    %c0_i32 = arith.constant 0 : i32
    %c0_i32_0 = arith.constant 0 : i32
    return %arg0, %c0_i32, %arg1 : i32, i32, i32
  }
}

</mosaic_0001>

<llo_original>
// kernel: tpu_custom_call.1
$region0: #{tpu_custom_call.1}
  #allocation0 [shape = 'u32[]', space=smem, size = 0x4, offset = 0x4, fixed_abs, tag = 'smem constant byte address 0x4 - core index']
  #allocation1 [shape = 'u32[144,128]{1,0:T(1,128)}', space=vmem, size = 0x12000, scoped, tag = 'internal scratch']
  %s0 = inlined_call_operand.hbm [shape: f32[2,4,256], index: 0, kind: input, shape index: {}]
  %s1 = inlined_call_operand.vmem [shape: f32[1,4,1], index: 1, kind: input, shape index: {}]
  %s2 = inlined_call_operand.hbm [shape: f32[2,4,256], index: 2, kind: output, shape index: {}]
  %s3 = sld [smem:[#allocation0]]
  $region45: #{tpu_custom_call.1} parent=0
    _
  %s5 = ssub.s32 1, %s3
  %s6 = scalar_select 0, %s5, %s3
  $region1: #{tpu_custom_call.1} parent=0
    #allocation2 [shape = 'u8[4096]{0}', space=vmem, size = 0x1000, scoped, tag = 'input window, operand 0']
    #allocation3 [shape = 's32[2]{0}', space=sflag, size = 0x8, scoped, tag = 'scoped memory for tpu_custom_call.1']
    #allocation4 [shape = 's32[2]{0}', space=sflag, size = 0x8, scoped, tag = 'scoped memory for tpu_custom_call.1']
    #allocation5 [shape = 'u8[4096]{0}', space=vmem, size = 0x1000, scoped, tag = 'output window, operand 0']
    %7 = vsyncpa [#allocation3], 0
    %s8 = scalar_lea.sflag [#allocation3], 1
    %9 = vsyncpa %s8, 0
    %10 = vsyncpa [#allocation4], 0
    %s11 = scalar_lea.sflag [#allocation4], 1
    %12 = vsyncpa %s11, 0
    loop: start=0, step=1, limit=6
    $region2: #{tpu_custom_call.1} parent=1 // loop_pre_header
      _
    $region3: #{tpu_custom_call.1} parent=1 // loop_header
      %s14 = sphi 0, %s18
      %p15 = scmp.ge.s32.totalorder %s14, 6
      %s21 = sphi 0, %s33
      %s22 = sphi 0, %s29
      %s23 = sphi 0, %s21
      %s24 = sphi 0, %s22
      %s25 = sphi 0, %s23
      %s26 = sphi 0, %s24
      %s38 = sphi 0, %s40
      %s41 = sphi 0, %s38
      %s42 = sphi 0, %s41
      %s58 = sphi 0, %s42
      %s62 = sphi 0, %s62
      %s64 = sphi 0, %s62
      %s65 = sphi 0, %s64
      %s79 = sphi 0, %s65
      %s87 = sphi 0, %s89
      %s90 = sphi 0, %s87
      %s91 = sphi 0, %s90
      %s107 = sphi 0, %s91
    $region4: #{tpu_custom_call.1} parent=1 // loop_header_branch
      %17 = sbr.rel (%p15) target = $region8
    $region5: #{tpu_custom_call.1} parent=1 // loop_body
      %s19 = ssub.s32 %s14, 1
      %s20 = ssub.s32 %s14, 2
      %s27 = sadd.s32 1, %s22
      %p28 = scmp.ge.s32.totalorder %s27, 2
      %s29 = scalar_select %p28, 0, %s27
      %s30 = sadd.s32 1, %s21
      %s31 = scalar_select %p28, %s30, %s21
      %p32 = scmp.ge.s32.totalorder %s31, 2
      %s33 = scalar_select %p32, 0, %s31
      %s34 = ssub.s32 %s21, %s33
      %s35 = ssub.s32 %s22, %s29
      %s36 = sor.u32 %s34, %s35
      %p37 = scmp.eq.s32.totalorder %s36, 0
      %s39 = sadd.s32 %s38, 1
      %s40 = scalar_select %p37, %s38, %s39
      %p43 = pneg %p37
      %p44 = scmp.eq.s32.totalorder %s14, 3
      %p45 = por %p43, %p44
      %p46 = scmp.ne.s32.totalorder %s38, %s41
      %p47 = scmp.eq.s32.totalorder %s14, 0
      %p48 = por %p46, %p47
      %p49 = scmp.ne.s32.totalorder %s38, %s41
      %p50 = scmp.eq.s32.totalorder %s19, 3
      %p51 = por %p49, %p50
      %p52 = scmp.ne.s32.totalorder %s41, %s42
      %p53 = scmp.eq.s32.totalorder %s19, 0
      %p54 = por %p52, %p53
      %p55 = scmp.ne.s32.totalorder %s41, %s42
      %p56 = scmp.eq.s32.totalorder %s20, 3
      %p57 = por %p55, %p56
      %p59 = scmp.ne.s32.totalorder %s42, %s58
      %p60 = scmp.eq.s32.totalorder %s20, 0
      %p61 = por %p59, %p60
      %s63 = sadd.s32 %s62, 1
      %p66 = scmp.eq.s32.totalorder %s14, 3
      %p67 = scmp.ne.s32.totalorder %s62, %s64
      %p68 = scmp.eq.s32.totalorder %s14, 0
      %p69 = por %p67, %p68
      %p70 = scmp.ne.s32.totalorder %s62, %s64
      %p71 = scmp.eq.s32.totalorder %s19, 3
      %p72 = por %p70, %p71
      %p73 = scmp.ne.s32.totalorder %s64, %s65
      %p74 = scmp.eq.s32.totalorder %s19, 0
      %p75 = por %p73, %p74
      %p76 = scmp.ne.s32.totalorder %s64, %s65
      %p77 = scmp.eq.s32.totalorder %s20, 3
      %p78 = por %p76, %p77
      %p80 = scmp.ne.s32.totalorder %s65, %s79
      %p81 = scmp.eq.s32.totalorder %s20, 0
      %p82 = por %p80, %p81
      %s83 = ssub.s32 %s21, %s33
      %s84 = ssub.s32 %s22, %s29
      %s85 = sor.u32 %s83, %s84
      %p86 = scmp.eq.s32.totalorder %s85, 0
      %s88 = sadd.s32 %s87, 1
      %s89 = scalar_select %p86, %s87, %s88
      %p92 = pneg %p86
      %p93 = scmp.eq.s32.totalorder %s14, 3
      %p94 = por %p92, %p93
      %p95 = scmp.ne.s32.totalorder %s87, %s90
      %p96 = scmp.eq.s32.totalorder %s14, 0
      %p97 = por %p95, %p96
      %p98 = scmp.ne.s32.totalorder %s87, %s90
      %p99 = scmp.eq.s32.totalorder %s19, 3
      %p100 = por %p98, %p99
      %p101 = scmp.ne.s32.totalorder %s90, %s91
      %p102 = scmp.eq.s32.totalorder %s19, 0
      %p103 = por %p101, %p102
      %p104 = scmp.ne.s32.totalorder %s90, %s91
      %p105 = scmp.eq.s32.totalorder %s20, 3
      %p106 = por %p104, %p105
      %p108 = scmp.ne.s32.totalorder %s91, %s107
      %p109 = scmp.eq.s32.totalorder %s20, 0
      %p110 = por %p108, %p109
      %p111 = scmp.le.s32.totalorder 1, %s14
      %p112 = scmp.lt.s32.totalorder %s14, 5
      %p113 = pnand %p111, %p112
      %p114 = pneg %p113
      // Predicated region
      $region9: #{tpu_custom_call.1} parent=5 // pred_check
        _
      $region10: #{tpu_custom_call.1} parent=5 // pred_check_branch
        %116 = sbr.rel (%p113) target = $region12
      $region11: #{tpu_custom_call.1} parent=5 // pred_region
        %s117 = ssub.s32 %s14, 1
        // Predicated region
        $region13: #{tpu_custom_call.1} parent=11 // pred_check
          %p118 = pneg %p75
        $region14: #{tpu_custom_call.1} parent=11 // pred_check_branch
          %120 = sbr.rel (%p118) target = $region16
        $region15: #{tpu_custom_call.1} parent=11 // pred_region
          _
        $region16: #{tpu_custom_call.1} parent=11 // pred_fallthru
          _
      $region12: #{tpu_custom_call.1} parent=5 // pred_fallthru
        _
      %p121 = scmp.lt.s32.totalorder %s14, 4
      // Predicated region
      $region17: #{tpu_custom_call.1} parent=5 // pred_check
        %p122 = pneg %p121
      $region18: #{tpu_custom_call.1} parent=5 // pred_check_branch
        %124 = sbr.rel (%p122) target = $region20
      $region19: #{tpu_custom_call.1} parent=5 // pred_region
        // Predicated region
        $region21: #{tpu_custom_call.1} parent=19 // pred_check
          %p125 = pneg %p48
        $region22: #{tpu_custom_call.1} parent=19 // pred_check_branch
          %127 = sbr.rel (%p125) target = $region24
        $region23: #{tpu_custom_call.1} parent=19 // pred_region
          %s128 = sand.u32 %s38, 1
          %s129 = scalar_lea.sflag [#allocation3], %s128
          %s130 = sand.u32 %s38, 1
          %s131 = smul.addr %s130, 4
          %s132 = scalar_lea.vmem [#allocation2], %s131
          %s134 = ssub.s32 64, 64
          %135 = vsyncadd %s129, %s134
          %s136 = smul.addr %s21, 2
          %s137 = sadd.s32 %s22, %s136
          %s138 = smul.addr %s137, 64
          %s139 = scalar_lea.hbm %s0, %s138
          %s141 = sshll.u32 %s132, 4
          %s142 = int_to_ptr.vmem [resolvable:$true] %s141
          %144 = dma.hbm_to_vmem [thread:$0]  %s139, 64, %s142, %s129
        $region24: #{tpu_custom_call.1} parent=19 // pred_fallthru
          _
      $region20: #{tpu_custom_call.1} parent=5 // pred_fallthru
        _
      %p145 = scmp.le.s32.totalorder 1, %s14
      %p146 = scmp.lt.s32.totalorder %s14, 5
      %p147 = pnand %p145, %p146
      %p148 = pneg %p147
      // Predicated region
      $region25: #{tpu_custom_call.1} parent=5 // pred_check
        _
      $region26: #{tpu_custom_call.1} parent=5 // pred_check_branch
        %150 = sbr.rel (%p147) target = $region28
      $region27: #{tpu_custom_call.1} parent=5 // pred_region
        %s151 = ssub.s32 %s14, 1
        %s152 = sand.u32 %s41, 1
        %s153 = scalar_lea.sflag [#allocation3], %s152
        %s154 = sand.u32 %s41, 1
        %s155 = smul.addr %s154, 4
        %s156 = scalar_lea.vmem [#allocation2], %s155
        // Predicated region
        $region29: #{tpu_custom_call.1} parent=27 // pred_check
          %p157 = pneg %p54
        $region30: #{tpu_custom_call.1} parent=27 // pred_check_branch
          %159 = sbr.rel (%p157) target = $region32
        $region31: #{tpu_custom_call.1} parent=27 // pred_region
          %160 = dma.done %s153, 64
        $region32: #{tpu_custom_call.1} parent=27 // pred_fallthru
          _
        %s161 = sand.u32 %s41, 1
        %s162 = scalar_lea.sflag [#allocation3], %s161
        %s163 = sand.u32 %s41, 1
        %s164 = smul.addr %s163, 4
        %s165 = scalar_lea.vmem [#allocation2], %s164
        %p166 = pneg %p54
        %p167 = pneg %p51
        %p168 = pneg %p75
        %p169 = pneg %p72
        %p170 = pneg %p103
        %p171 = pneg %p100
        %s172 = sand.u32 %s90, 1
        %s173 = scalar_lea.sflag [#allocation4], %s172
        %s174 = sand.u32 %s90, 1
        %s175 = smul.addr %s174, 4
        %s176 = scalar_lea.vmem [#allocation5], %s175
        %v177 = vld [vmem:[%s156] sm:$0xf]
        %vm178 = vcmask 1043456
        %v179 = vsel %vm178, %v177, 0.0
        %v180 = vrot.slane %v179, 4
        %v181 = vadd.f32 %v179, %v180
        %v182 = vrot.slane %v181, 2
        %v183 = vadd.f32 %v181, %v182
        %v184 = vrot.slane %v183, 1
        %v185 = vadd.f32 %v183, %v184
        %v186 = vmul.f32 %v177, %v177
        %v187 = vsel %vm178, %v186, 0.0
        %v188 = vrot.slane %v187, 4
        %v189 = vadd.f32 %v187, %v188
        %v190 = vrot.slane %v189, 2
        %v191 = vadd.f32 %v189, %v190
        %v192 = vrot.slane %v191, 1
        %v193 = vadd.f32 %v191, %v192
        %v194 = vmul.f32 %v185, 0.25
        %v195 = vmul.f32 %v193, 0.25
        %v196 = vmul.f32 %v194, %v194
        %v197 = vsub.f32 %v195, %v196
        %v198 = vmax.f32 %v197, 0.0
        %v199 = vadd.f32 %v198, 1e-05
        %v200 = vrsqrt.pop %v199
        %v201 = vmul.f32 %v194, %v200
        %v202 = vld [vmem:[%s1] sm:$0xf]
        %v203 = vmul.f32 %v177, %v200
        %v204 = vsub.f32 %v203, %v201
        %206 = vset.pattern.permute.xlu0 0
        %207 = vperm.xlu0 %206, %v202
        %v208 = vpop.permute.xlu0 %207
        %v210 = vmul.f32 %v204, %v208
        %211 = vst [vmem:[%s176] sm:$0xf] %v210
        %s212 = sand.u32 %s90, 1
        %s213 = scalar_lea.sflag [#allocation4], %s212
        %s214 = sand.u32 %s90, 1
        %s215 = smul.addr %s214, 4
        %s216 = scalar_lea.vmem [#allocation5], %s215
        // Predicated region
        $region33: #{tpu_custom_call.1} parent=27 // pred_check
          %p217 = pneg %p100
        $region34: #{tpu_custom_call.1} parent=27 // pred_check_branch
          %219 = sbr.rel (%p217) target = $region36
        $region35: #{tpu_custom_call.1} parent=27 // pred_region
          %s221 = ssub.s32 64, 64
          %222 = vsyncadd %s213, %s221
          %s223 = smul.addr %s23, 2
          %s224 = sadd.s32 %s24, %s223
          %s225 = smul.addr %s224, 64
          %s226 = scalar_lea.hbm %s2, %s225
          %s228 = sshll.u32 %s216, 4
          %s229 = int_to_ptr.vmem [resolvable:$true] %s228
          %231 = dma.vmem_to_hbm [thread:$0]  %s229, 64, %s226, %s213
        $region36: #{tpu_custom_call.1} parent=27 // pred_fallthru
          _
      $region28: #{tpu_custom_call.1} parent=5 // pred_fallthru
        _
      %p232 = scmp.le.s32.totalorder 2, %s14
      // Predicated region
      $region37: #{tpu_custom_call.1} parent=5 // pred_check
        %p233 = pneg %p232
      $region38: #{tpu_custom_call.1} parent=5 // pred_check_branch
        %235 = sbr.rel (%p233) target = $region40
      $region39: #{tpu_custom_call.1} parent=5 // pred_region
        %s236 = ssub.s32 %s14, 2
        // Predicated region
        $region41: #{tpu_custom_call.1} parent=39 // pred_check
          %p237 = pneg %p106
        $region42: #{tpu_custom_call.1} parent=39 // pred_check_branch
          %239 = sbr.rel (%p237) target = $region44
        $region43: #{tpu_custom_call.1} parent=39 // pred_region
          %s240 = sand.u32 %s91, 1
          %s241 = scalar_lea.sflag [#allocation4], %s240
          %s242 = sand.u32 %s91, 1
          %s243 = smul.addr %s242, 4
          %s244 = scalar_lea.vmem [#allocation5], %s243
          %245 = dma.done %s241, 64
        $region44: #{tpu_custom_call.1} parent=39 // pred_fallthru
          _
      $region40: #{tpu_custom_call.1} parent=5 // pred_fallthru
        _
    $region6: #{tpu_custom_call.1} parent=1 // loop_footer
      %s18 = sadd.s32 1, %s14
    $region7: #{tpu_custom_call.1} parent=1 // loop_footer_branch
      %13 = sbr.rel target = $region3
    $region8: #{tpu_custom_call.1} parent=1 // loop_exit
      _
    %246 = vsyncpa [#allocation3], 1
    %s247 = scalar_lea.sflag [#allocation3], 1
    %248 = vsyncpa %s247, 1
    %249 = vsyncpa [#allocation4], 1
    %s250 = scalar_lea.sflag [#allocation4], 1
    %251 = vsyncpa %s250, 1

</llo_original>
